<compile_context>
chip_gen: v5e
topology: v5e:2x2
jax: 0.10.0
libtpu: 0.0.40
codegen_flags: <defaults>
</compile_context>

<pallas_src>
import jax
import jax.numpy as jnp
from jax.experimental import pallas as pl
from jax.experimental.pallas import tpu as pltpu

_LANE = 1024 * 1024  # unused sentinel guard (keep linters quiet)  # noqa: F841


def _copy_kernel(x_ref, o_ref):
    # Identity copy of one lane-dense tile — the hot path of a materialized
    # .view() is just a contiguous memory copy.
    o_ref[...] = x_ref[...]


def _choose_layout(n_elem, itemsize):
    """Pick (width, rows, block_rows, padded_n) for a lane-dense 2-D copy slab."""
    LANE = 128
    MAX_WIDTH = 1024
    # dtype-aware sublane packing: 8 rows/vreg for 32-bit, 16 for 16-bit,
    # 32 for 8-bit dtypes (keeps vld/vst unmasked and DMAs full width).
    sub = {4: 8, 2: 16, 1: 32}.get(itemsize, 8)

    if n_elem % LANE == 0:
        # Aligned fast path: widest power-of-two multiple of 128 (<=1024) that
        # divides n_elem exactly -> reshape only, no padding, no extra HBM pass.
        width = LANE
        while width * 2 <= MAX_WIDTH and n_elem % (width * 2) == 0:
            width *= 2
        rows = n_elem // width
        padded_n = n_elem
    else:
        # Ragged fallback: pad the flat vector up to a whole number of rows.
        # Pad amount <= width - 1 elements (negligible traffic).
        width = LANE
        while width * 2 <= MAX_WIDTH and n_elem >= (width * 2) * sub:
            width *= 2
        rows = pl.cdiv(n_elem, width)
        padded_n = rows * width

    # Rows per grid step: target ~4 MiB per tile.  1 input + 1 output, each
    # double-buffered -> ~16 MiB VMEM; vmem_limit_bytes is raised to 32 MiB
    # (fits v5e/v6e 128 MiB physical and v7x's 64 MiB physical / 32 MiB default).
    tile_bytes = 4 * 1024 * 1024
    block_rows = (tile_bytes // (width * itemsize)) // sub * sub
    block_rows = max(sub, block_rows)
    if block_rows >= rows:
        # Block equal to the full (leading) array dim is always legal, even if
        # `rows` is not a sublane multiple.
        block_rows = rows
    # else: block_rows is a multiple of `sub` (>= 8); the last grid block may be
    # partial — Pallas masks the out-of-bounds stores, no padding needed.
    return width, rows, block_rows, padded_n


def view_pallas(x, shape):
    """Pallas equivalent of View(shape)(x) for a single-int `shape` (e.g. -1 or N)."""
    n_elem = x.size
    target = int(shape)
    if target == -1:
        target = n_elem
    assert target == n_elem, "view size must match number of elements"
    # TODO(synk): torch.view is zero-copy (aliasing); a Pallas kernel necessarily
    # materializes a copy — the aliasing semantics themselves are untranslatable.

    itemsize = jnp.dtype(x.dtype).itemsize
    width, rows, block_rows, padded_n = _choose_layout(n_elem, itemsize)

    # Row-major flatten (matches torch contiguous .view) — metadata-only glue.
    flat = jnp.reshape(x, (-1,))
    if padded_n != n_elem:
        flat = jnp.pad(flat, (0, padded_n - n_elem))
    x2d = jnp.reshape(flat, (rows, width))  # lane-dense 2-D slab

    out2d = pl.pallas_call(
        _copy_kernel,
        out_shape=jax.ShapeDtypeStruct((rows, width), x.dtype),
        grid=(pl.cdiv(rows, block_rows),),
        in_specs=[pl.BlockSpec((block_rows, width), lambda i: (i, 0))],
        out_specs=pl.BlockSpec((block_rows, width), lambda i: (i, 0)),
        # Donate the input slab so XLA can reuse its HBM buffer for the output.
        input_output_aliases={0: 0},
        # Pure memory op: let the XLA scheduler overlap it with neighbors.
        cost_estimate=pl.CostEstimate(
            flops=0, transcendentals=0, bytes_accessed=2 * padded_n * itemsize),
        compiler_params=pltpu.CompilerParams(
            dimension_semantics=("parallel",),   # v7x: shard grid across both TCs
            vmem_limit_bytes=32 * 1024 * 1024),  # room for 4 MiB double-buffered tiles
    )(x2d)

    out = jnp.reshape(out2d, (padded_n,))
    if padded_n != n_elem:
        out = out[:n_elem]
    return jnp.reshape(out, (target,))


if __name__ == "__main__":
    key = jax.random.PRNGKey(0)

    # Small NCHW input consistent with typical use: batch=2, channels=4, 16x16.
    x = jax.random.normal(key, (2, 4, 16, 16), dtype=jnp.float32)
    y = jax.block_until_ready(view_pallas(x, -1))  # View(-1): flatten
    ref = jnp.reshape(x, (-1,))
    assert y.shape == (x.size,)
    assert y.dtype == x.dtype
    assert bool(jnp.all(y == ref))

    # Ragged size + sub-32-bit dtype path (exercises padding + dtype-aware tiling).
    xb = jax.random.normal(jax.random.PRNGKey(0), (3, 5, 7)).astype(jnp.bfloat16)
    yb = jax.block_until_ready(view_pallas(xb, -1))
    assert yb.shape == (xb.size,)
    assert yb.dtype == xb.dtype
    assert bool(jnp.all(yb == jnp.reshape(xb, (-1,))))

    print("KERNEL_OK")
</pallas_src>

<mosaic_0001>
module attributes {stable_mosaic.version = 11 : i64} {
  func.func @_copy_kernel(%arg0: i32, %arg1: memref<2x1024xf32, #tpu.memory_space<vmem>>, %arg2: memref<2x1024xf32, #tpu.memory_space<vmem>>) attributes {dimension_semantics = [#tpu.dimension_semantics<parallel>], iteration_bounds = array<i64: 1>, scalar_prefetch = 0 : i64, scratch_operands = 0 : i64, tpu.core_type = #tpu.core_type<tc>, window_params = [{transform_indices = @transform_0, window_bounds = array<i64: 2, 1024>}, {transform_indices = @transform_1, window_bounds = array<i64: 2, 1024>}]} {
    %c0 = arith.constant 0 : index
    %c0_0 = arith.constant 0 : index
    %0 = vector.load %arg1[%c0, %c0_0] : memref<2x1024xf32, #tpu.memory_space<vmem>>, vector<2x1024xf32>
    %c0_1 = arith.constant 0 : index
    %c0_2 = arith.constant 0 : index
    %1 = vector.load %arg2[%c0_1, %c0_2] : memref<2x1024xf32, #tpu.memory_space<vmem>>, vector<2x1024xf32>
    tpu.vector_store %arg2[%c0_1, %c0_2], %0 {strides = array<i32>} : memref<2x1024xf32, #tpu.memory_space<vmem>>, vector<2x1024xf32>,
    return
  }
  func.func @transform_0(%arg0: i32) -> (i32, i32) {
    %c0_i32 = arith.constant 0 : i32
    %c0_i32_0 = arith.constant 0 : i32
    return %arg0, %c0_i32 : i32, i32
  }
  func.func @transform_1(%arg0: i32) -> (i32, i32) {
    %c0_i32 = arith.constant 0 : i32
    %c0_i32_0 = arith.constant 0 : i32
    return %arg0, %c0_i32 : i32, i32
  }
}

</mosaic_0001>

<llo_original>
// kernel: tpu_custom_call.1
$region0: #{tpu_custom_call.1}
  #allocation0 [shape = 'u32[]', space=smem, size = 0x4, offset = 0x4, fixed_abs, tag = 'smem constant byte address 0x4 - core index']
  #allocation1 [shape = 'u32[72,128]{1,0:T(1,128)}', space=vmem, size = 0x9000, scoped, tag = 'internal scratch']
  %s0 = inlined_call_operand.hbm [shape: f32[2,1024], index: 0, kind: input, shape index: {}, may-alias: {0,1}]
  %s1 = inlined_call_operand.hbm [shape: f32[2,1024], index: 1, kind: output, shape index: {}, may-alias: {0,1}]
  %s2 = sld [smem:[#allocation0]]
  $region18: #{tpu_custom_call.1} parent=0
    _
  %s4 = ssub.s32 1, %s2
  %s5 = scalar_select 0, %s4, %s2
  $region1: #{tpu_custom_call.1} parent=0
    #allocation2 [shape = 'u8[8192]{0}', space=vmem, size = 0x2000, scoped, tag = 'input window, operand 0, single buffered']
    #allocation3 [shape = 's32[1]{0}', space=sflag, size = 0x4, scoped, tag = 'scoped memory for tpu_custom_call.1']
    #allocation4 [shape = 's32[1]{0}', space=sflag, size = 0x4, scoped, tag = 'scoped memory for tpu_custom_call.1']
    #allocation5 [shape = 'u8[8192]{0}', space=vmem, size = 0x2000, scoped, tag = 'output window, operand 0, single buffered']
    %6 = vsyncpa [#allocation3], 0
    %7 = vsyncpa [#allocation4], 0
    // Predicated region
    $region2: #{tpu_custom_call.1} parent=1 // pred_check
      _
    $region3: #{tpu_custom_call.1} parent=1 // pred_check_branch
      %9 = sbr.rel (0) target = $region5
    $region4: #{tpu_custom_call.1} parent=1 // pred_region
      %11 = vsyncadd [#allocation3], 0
      %s13 = sshll.u32 %s0, 4
      %s14 = int_to_ptr.hbm [resolvable:$true] %s13
      %s15 = sshll.u32 [#allocation2], 4
      %s16 = int_to_ptr.vmem [resolvable:$true] %s15
      %18 = dma.hbm_to_vmem [thread:$0]  %s14, 256, %s16, [#allocation3]
    $region5: #{tpu_custom_call.1} parent=1 // pred_fallthru
      _
    // Predicated region
    $region6: #{tpu_custom_call.1} parent=1 // pred_check
      _
    $region7: #{tpu_custom_call.1} parent=1 // pred_check_branch
      %20 = sbr.rel (0) target = $region9
    $region8: #{tpu_custom_call.1} parent=1 // pred_region
      %22 = dma.done [#allocation3], 256
    $region9: #{tpu_custom_call.1} parent=1 // pred_fallthru
      _
    %v23 = vld [vmem:[#allocation2] sm:$0xff]
    %v24 = vld [vmem:[#allocation2 + $0x8] sm:$0xff]
    %25 = vst [vmem:[#allocation5] sm:$0xff] %v23
    %26 = vst [vmem:[#allocation5 + $0x8] sm:$0xff] %v24
    // Predicated region
    $region10: #{tpu_custom_call.1} parent=1 // pred_check
      _
    $region11: #{tpu_custom_call.1} parent=1 // pred_check_branch
      %28 = sbr.rel (0) target = $region13
    $region12: #{tpu_custom_call.1} parent=1 // pred_region
      %30 = vsyncadd [#allocation4], 0
      %s32 = sshll.u32 [#allocation5], 4
      %s33 = int_to_ptr.vmem [resolvable:$true] %s32
      %s34 = sshll.u32 %s1, 4
      %s35 = int_to_ptr.hbm [resolvable:$true] %s34
      %37 = dma.vmem_to_hbm [thread:$0]  %s33, 256, %s35, [#allocation4]
    $region13: #{tpu_custom_call.1} parent=1 // pred_fallthru
      _
    // Predicated region
    $region14: #{tpu_custom_call.1} parent=1 // pred_check
      _
    $region15: #{tpu_custom_call.1} parent=1 // pred_check_branch
      %39 = sbr.rel (0) target = $region17
    $region16: #{tpu_custom_call.1} parent=1 // pred_region
      %41 = dma.done [#allocation4], 256
    $region17: #{tpu_custom_call.1} parent=1 // pred_fallthru
      _
    %42 = vsyncpa [#allocation3], 1
    %43 = vsyncpa [#allocation4], 1

</llo_original>
